<compile_context>
chip_gen: v5e
topology: v5e:2x2
jax: 0.10.0
libtpu: 0.0.40
codegen_flags: <defaults>
</compile_context>

<pallas_src>
import functools

import jax
import jax.numpy as jnp
from jax.experimental import pallas as pl
from jax.experimental.pallas import tpu as pltpu


def _round_up(x, m):
    return ((x + m - 1) // m) * m


# ---------------------------------------------------------------------------
# Kernel 1: batch-tiled cross-entropy terms (nll + eta-weighted CE).
# ---------------------------------------------------------------------------
def _ce_kernel(logits_ref, labels_ref, rhs_ref, out_ref, acc_ref, *, batch):
    i = pl.program_id(1)

    @pl.when(i == 0)
    def _():
        acc_ref[...] = jnp.zeros_like(acc_ref)

    TB, C = logits_ref.shape
    # logical (un-clamped) block index -> global row offsets for this tile
    blk = pl.program_id(0) * pl.num_programs(1) + i
    row = jax.lax.broadcasted_iota(jnp.int32, (TB, 1), 0) + blk * TB
    valid = row < batch                                     # [TB, 1] bool

    # Zero invalid rows BEFORE max/exp: with no host-side padding, the ragged
    # last tile (and clamped overrun tiles of the split axis) contains
    # undefined data that must never reach exp/log.
    logits = jnp.where(valid, logits_ref[...].astype(jnp.float32), 0.0)
    labels = labels_ref[...]                                # [TB, 1] int32

    # numerically stable log-sum-exp along the class axis
    m = jnp.max(logits, axis=1, keepdims=True)              # [TB, 1]
    sumexp = jnp.sum(jnp.exp(logits - m), axis=1, keepdims=True)
    lse = jnp.log(sumexp) + m                                # [TB, 1]

    # Select the label's log-prob per row (0 elsewhere / for invalid rows),
    # then gather BOTH loss terms with a single MXU matmul against
    # rhs[C, 128] (col 0 = ones, col 1 = eta, rest zero):
    #   pair[:, 0] = log_softmax(x)[r, y_r]
    #   pair[:, 1] = eta[y_r] * log_softmax(x)[r, y_r]
    col = jax.lax.broadcasted_iota(jnp.int32, (TB, C), 1)
    cond = (col == labels) & valid                           # [TB, C]
    sel = jnp.where(cond, logits - lse, 0.0)                 # [TB, C]
    pair = jnp.dot(sel, rhs_ref[...], preferred_element_type=jnp.float32)

    # lane/sublane-dense accumulation: pure vreg-wise VALU adds per step
    acc_ref[...] += jnp.sum(pair.reshape(TB // 8, 8, 128), axis=0)

    @pl.when(i == pl.num_programs(1) - 1)
    def _():
        # single cross-sublane reduce at finalize; lane-dense (1, 128) store
        out_ref[...] = jnp.sum(acc_ref[...], axis=0, keepdims=True)


def _pick_batch_tile(batch, num_classes, f32_tile_bytes=2 * 1024 * 1024):
    # Size the batch tile purely by a byte budget (~2 MiB of f32 working set
    # per tile; no hard row cap) so small-C / large-B cases keep the
    # mem-bound kernel near the HBM roofline on every generation.
    b8 = _round_up(batch, 8)
    rows = max(8, (f32_tile_bytes // (4 * num_classes)) // 8 * 8)
    return min(b8, rows)


def ce_terms(logits, labels, eta):
    B, C = logits.shape
    TB = _pick_batch_tile(B, C)
    nblk_total = -(-B // TB)               # ragged last tile handled in-kernel
    nsplit = 2 if nblk_total >= 2 else 1   # leading axis feeds v7x's 2nd TC
    nblk = -(-nblk_total // nsplit)
    last_blk = nblk_total - 1

    labels2d = labels.astype(jnp.int32).reshape(B, 1)
    # rhs[:, 0] = 1, rhs[:, 1] = eta -> one matmul yields both loss terms.
    # TODO(synk): for very large class counts use a narrow (C, 8) rhs to cap
    # the resident rhs VMEM footprint.
    rhs = jnp.concatenate(
        [jnp.ones((C, 1), jnp.float32),
         eta.astype(jnp.float32).reshape(C, 1),
         jnp.zeros((C, 126), jnp.float32)], axis=1)

    def row_block_map(s, i):
        # Clamp overrun steps of the split axis onto the last real block;
        # their rows are masked out in-kernel via the global row index.
        return (jnp.minimum(s * nblk + i, last_blk), 0)

    out = pl.pallas_call(
        functools.partial(_ce_kernel, batch=B),
        out_shape=jax.ShapeDtypeStruct((nsplit, 128), jnp.float32),
        grid_spec=pltpu.PrefetchScalarGridSpec(
            num_scalar_prefetch=0,
            grid=(nsplit, nblk),
            in_specs=[
                pl.BlockSpec((TB, C), row_block_map),
                pl.BlockSpec((TB, 1), row_block_map),
                pl.BlockSpec((C, 128), lambda s, i: (0, 0)),
            ],
            out_specs=pl.BlockSpec((1, 128), lambda s, i: (s, 0)),
            scratch_shapes=[pltpu.VMEM((8, 128), jnp.float32)],
        ),
        compiler_params=pltpu.CompilerParams(
            # leading axis parallel -> both v7x TensorCores get half the
            # batch; harmless serial loop on single-TC v5e/v6e.
            dimension_semantics=("parallel", "arbitrary"),
            vmem_limit_bytes=32 * 1024 * 1024),
    )(logits, labels2d, rhs)

    sums = jnp.sum(out, axis=0)            # combine per-split partial sums
    nll = -sums[0] / B                     # cross_entropy (mean reduction)
    custom = -sums[1] / B                  # eta-weighted CE
    return nll, custom


# ---------------------------------------------------------------------------
# Kernel 2: sum of squares over all model parameters (L2 prior).
# ---------------------------------------------------------------------------
def _sumsq_kernel(x_ref, o_ref, acc_ref):
    i = pl.program_id(1)

    @pl.when(i == 0)
    def _():
        acc_ref[...] = jnp.zeros_like(acc_ref)

    x = x_ref[...].astype(jnp.float32)                      # [R, 128]
    xsq = x * x
    r = xsq.shape[0]
    # lane/sublane-dense accumulation: pure vreg-wise VALU adds per step
    acc_ref[...] += jnp.sum(xsq.reshape(r // 8, 8, 128), axis=0)

    @pl.when(i == pl.num_programs(1) - 1)
    def _():
        # single cross-sublane reduce at finalize; lane-dense (1, 128) store
        o_ref[...] = jnp.sum(acc_ref[...], axis=0, keepdims=True)


def _sumsq_slab(flats, dtype, rows_per_block, nsplit):
    n = sum(int(f.shape[0]) for f in flats)
    rows_needed = -(-n // 128)
    rpb = max(8, min(rows_per_block, _round_up(rows_needed, 8)) // 8 * 8)
    nblk_total = -(-rows_needed // rpb)
    if nblk_total < nsplit:
        nsplit = 1                       # tiny model: no point splitting cores
    nblk = -(-nblk_total // nsplit)      # blocks per split
    total_rows = nsplit * nblk * rpb

    # Fold the padding into the concatenate (zeros tail) instead of a separate
    # jnp.pad -> one fewer full HBM read+write pass over the parameters.
    tail = total_rows * 128 - n
    parts = list(flats) + ([jnp.zeros((tail,), dtype)] if tail else [])
    slab = jnp.concatenate(parts).reshape(total_rows, 128)
    # TODO(synk): eliminate the slab entirely (per-parameter pl.ANY refs +
    # manual (rpb,128) DMA windows) to drop the remaining extra HBM pass.

    out = pl.pallas_call(
        _sumsq_kernel,
        out_shape=jax.ShapeDtypeStruct((nsplit, 128), jnp.float32),
        grid_spec=pltpu.PrefetchScalarGridSpec(
            num_scalar_prefetch=0,
            grid=(nsplit, nblk),
            in_specs=[pl.BlockSpec((rpb, 128),
                                   lambda s, i, nb=nblk: (s * nb + i, 0))],
            out_specs=pl.BlockSpec((1, 128), lambda s, i: (s, 0)),
            scratch_shapes=[pltpu.VMEM((8, 128), jnp.float32)],
        ),
        compiler_params=pltpu.CompilerParams(
            # leading axis parallel -> splits across v7x's 2 TensorCores;
            # plain serial loop on single-TC chips.
            dimension_semantics=("parallel", "arbitrary"),
            vmem_limit_bytes=32 * 1024 * 1024),
    )(slab)
    return jnp.sum(out)


def params_sumsq(params, *, rows_per_block=8192, nsplit=2):
    # Group by dtype so jnp.concatenate never silently promotes (keeps the
    # slab and HBM traffic in each parameter's native dtype; cast to f32
    # happens on the VPU inside the kernel).
    groups = {}
    for p in params:
        groups.setdefault(jnp.dtype(p.dtype), []).append(jnp.ravel(p))
    total = jnp.float32(0.0)
    for dt, flats in groups.items():
        total = total + _sumsq_slab(flats, dt, rows_per_block, nsplit)
    return total


# ---------------------------------------------------------------------------
# ABNNLoss forward
# ---------------------------------------------------------------------------
def abnn_loss(outputs, labels, eta, model_parameters, weight_decay=0.0001):
    # TODO(synk): pallas_call is not differentiable by default; wrap with a
    # custom_vjp before using this loss under jax.grad.
    nll, custom = ce_terms(outputs, labels, eta)
    l2 = params_sumsq(model_parameters)
    return nll + weight_decay * l2 + custom


# pure-JAX reference for a correctness check
def abnn_loss_ref(outputs, labels, eta, model_parameters, weight_decay=0.0001):
    log_probs = jax.nn.log_softmax(outputs.astype(jnp.float32), axis=1)
    label_lp = jnp.take_along_axis(log_probs, labels[:, None], axis=1)[:, 0]
    nll = -jnp.mean(label_lp)
    l2 = sum(jnp.sum(p.astype(jnp.float32) ** 2) for p in model_parameters)
    custom = -jnp.mean(eta[labels] * label_lp)
    return nll + weight_decay * l2 + custom


if __name__ == "__main__":
    key = jax.random.PRNGKey(0)
    k_out, k_lab, kw1, kb1, kw2, kb2 = jax.random.split(key, 6)

    B, C, H = 8, 10, 32   # batch, num_classes, hidden

    outputs = jax.random.normal(k_out, (B, C), dtype=jnp.float32)
    labels = jax.random.randint(k_lab, (B,), 0, C, dtype=jnp.int32)

    # deterministic synthetic "model parameters" (a toy 2-layer MLP)
    model_parameters = [
        jax.random.normal(kw1, (H, 16), dtype=jnp.float32) * 0.1,
        jax.random.normal(kb1, (H,), dtype=jnp.float32) * 0.1,
        jax.random.normal(kw2, (C, H), dtype=jnp.float32) * 0.1,
        jax.random.normal(kb2, (C,), dtype=jnp.float32) * 0.1,
    ]

    # eta = nn.Parameter(torch.ones(Num_classes))
    eta = jnp.ones((C,), dtype=jnp.float32)
    weight_decay = 0.0001

    total = abnn_loss(outputs, labels, eta, model_parameters, weight_decay)
    total = jax.block_until_ready(total)

    ref = abnn_loss_ref(outputs, labels, eta, model_parameters, weight_decay)
    assert jnp.allclose(total, ref, rtol=1e-4, atol=1e-4), (total, ref)

    print("KERNEL_OK")
</pallas_src>

<mosaic_0001>
module attributes {stable_mosaic.version = 11 : i64} {
  func.func @_ce_kernel(%arg0: i32, %arg1: i32, %arg2: memref<8x10xf32, #tpu.memory_space<vmem>>, %arg3: memref<8x1xi32, #tpu.memory_space<vmem>>, %arg4: memref<10x128xf32, #tpu.memory_space<vmem>>, %arg5: memref<1x128xf32, #tpu.memory_space<vmem>>, %arg6: memref<8x128xf32, #tpu.memory_space<vmem>>) attributes {dimension_semantics = [#tpu.dimension_semantics<parallel>, #tpu.dimension_semantics<arbitrary>], iteration_bounds = array<i64: 1, 1>, scalar_prefetch = 0 : i64, scratch_operands = 1 : i64, tpu.core_type = #tpu.core_type<tc>, window_params = [{transform_indices = @transform_0, window_bounds = array<i64: 8, 10>}, {transform_indices = @transform_1, window_bounds = array<i64: 8, 1>}, {pipeline_mode = #tpu.pipeline_mode<synchronous>, transform_indices = @transform_2, window_bounds = array<i64: 10, 128>}, {transform_indices = @transform_3, window_bounds = array<i64: 1, 128>}]} {
    %c0_i32 = arith.constant 0 : i32
    %0 = arith.cmpi eq, %arg1, %c0_i32 : i32
    %1 = arith.extui %0 : i1 to i32
    %c0_i32_0 = arith.constant 0 : i32
    %2 = arith.cmpi ne, %1, %c0_i32_0 : i32
    scf.if %2 {
      %cst_18 = arith.constant 0.000000e+00 : f32
      %45 = vector.broadcast %cst_18 : f32 to vector<8x128xf32>
      %c0_19 = arith.constant 0 : index
      %c0_20 = arith.constant 0 : index
      %46 = vector.load %arg6[%c0_19, %c0_20] : memref<8x128xf32, #tpu.memory_space<vmem>>, vector<8x128xf32>
      tpu.vector_store %arg6[%c0_19, %c0_20], %45 {strides = array<i32>} : memref<8x128xf32, #tpu.memory_space<vmem>>, vector<8x128xf32>,
    } else {
    }
    %c1_i32 = arith.constant 1 : i32
    %3 = arith.muli %arg0, %c1_i32 : i32
    %4 = arith.addi %3, %arg1 : i32
    %5 = tpu.iota {dimensions = array<i32: 0>} : vector<8x1xi32>
    %c8_i32 = arith.constant 8 : i32
    %6 = arith.muli %4, %c8_i32 : i32
    %7 = vector.broadcast %6 : i32 to vector<8x1xi32>
    %8 = arith.addi %5, %7 : vector<8x1xi32>
    %c8_i32_1 = arith.constant 8 : i32
    %9 = vector.broadcast %c8_i32_1 : i32 to vector<8x1xi32>
    %10 = arith.cmpi slt, %8, %9 : vector<8x1xi32>
    %c0 = arith.constant 0 : index
    %c0_2 = arith.constant 0 : index
    %11 = vector.load %arg2[%c0, %c0_2] : memref<8x10xf32, #tpu.memory_space<vmem>>, vector<8x10xf32>
    %cst = arith.constant 0.000000e+00 : f32
    %12 = vector.shape_cast %10 : vector<8x1xi1> to vector<8x1xi1>
    %13 = vector.broadcast %12 : vector<8x1xi1> to vector<8x10xi1>
    %14 = vector.broadcast %cst : f32 to vector<8x10xf32>
    %15 = arith.select %13, %11, %14 : vector<8x10xi1>, vector<8x10xf32>
    %c0_3 = arith.constant 0 : index
    %c0_4 = arith.constant 0 : index
    %16 = vector.load %arg3[%c0_3, %c0_4] : memref<8x1xi32, #tpu.memory_space<vmem>>, vector<8x1xi32>
    %cst_5 = arith.constant dense<0xFF800000> : vector<8xf32>
    %17 = vector.multi_reduction <maximumf>, %15, %cst_5 [1] : vector<8x10xf32> to vector<8xf32>
    %18 = vector.shape_cast %17 : vector<8xf32> to vector<8x1xf32>
    %19 = vector.broadcast %18 : vector<8x1xf32> to vector<8x10xf32>
    %20 = arith.subf %15, %19 : vector<8x10xf32>
    %21 = math.exp %20 : vector<8x10xf32>
    %cst_6 = arith.constant dense<0.000000e+00> : vector<8xf32>
    %22 = vector.multi_reduction <add>, %21, %cst_6 [1] : vector<8x10xf32> to vector<8xf32>
    %23 = vector.shape_cast %22 : vector<8xf32> to vector<8x1xf32>
    %24 = math.log %23 : vector<8x1xf32>
    %25 = arith.addf %24, %18 : vector<8x1xf32>
    %26 = tpu.iota {dimensions = array<i32: 1>} : vector<8x10xi32>
    %27 = vector.broadcast %16 : vector<8x1xi32> to vector<8x10xi32>
    %28 = arith.cmpi eq, %26, %27 : vector<8x10xi32>
    %29 = vector.broadcast %10 : vector<8x1xi1> to vector<8x10xi1>
    %30 = arith.andi %28, %29 : vector<8x10xi1>
    %31 = vector.broadcast %25 : vector<8x1xf32> to vector<8x10xf32>
    %32 = arith.subf %15, %31 : vector<8x10xf32>
    %cst_7 = arith.constant 0.000000e+00 : f32
    %33 = vector.broadcast %cst_7 : f32 to vector<8x10xf32>
    %34 = arith.select %30, %32, %33 : vector<8x10xi1>, vector<8x10xf32>
    %c0_8 = arith.constant 0 : index
    %c0_9 = arith.constant 0 : index
    %35 = vector.load %arg4[%c0_8, %c0_9] : memref<10x128xf32, #tpu.memory_space<vmem>>, vector<10x128xf32>
    %cst_10 = arith.constant dense<0.000000e+00> : vector<8x128xf32>
    %36 = tpu.matmul %34, %35, %cst_10 {dimension_numbers = #tpu.dot_dimension_numbers<[1], [0], [0], [1], [0, 0, 1, 1], [], []>} : vector<8x10xf32>, vector<10x128xf32>, vector<8x128xf32> -> vector<8x128xf32>
    %c0_11 = arith.constant 0 : index
    %c0_12 = arith.constant 0 : index
    %37 = vector.load %arg6[%c0_11, %c0_12] : memref<8x128xf32, #tpu.memory_space<vmem>>, vector<8x128xf32>
    %38 = vector.shape_cast %36 : vector<8x128xf32> to vector<1x8x128xf32>
    %cst_13 = arith.constant dense<0.000000e+00> : vector<8x128xf32>
    %39 = vector.multi_reduction <add>, %38, %cst_13 [0] : vector<1x8x128xf32> to vector<8x128xf32>
    %40 = arith.addf %37, %39 : vector<8x128xf32>
    %c0_14 = arith.constant 0 : index
    %c0_15 = arith.constant 0 : index
    %41 = vector.load %arg6[%c0_14, %c0_15] : memref<8x128xf32, #tpu.memory_space<vmem>>, vector<8x128xf32>
    tpu.vector_store %arg6[%c0_14, %c0_15], %40 {strides = array<i32>} : memref<8x128xf32, #tpu.memory_space<vmem>>, vector<8x128xf32>,
    %c0_i32_16 = arith.constant 0 : i32
    %42 = arith.cmpi eq, %arg1, %c0_i32_16 : i32
    %43 = arith.extui %42 : i1 to i32
    %c0_i32_17 = arith.constant 0 : i32
    %44 = arith.cmpi ne, %43, %c0_i32_17 : i32
    scf.if %44 {
      %c0_18 = arith.constant 0 : index
      %c0_19 = arith.constant 0 : index
      %45 = vector.load %arg6[%c0_18, %c0_19] : memref<8x128xf32, #tpu.memory_space<vmem>>, vector<8x128xf32>
      %cst_20 = arith.constant dense<0.000000e+00> : vector<128xf32>
      %46 = vector.multi_reduction <add>, %45, %cst_20 [0] : vector<8x128xf32> to vector<128xf32>
      %47 = vector.shape_cast %46 : vector<128xf32> to vector<1x128xf32>
      %c0_21 = arith.constant 0 : index
      %c0_22 = arith.constant 0 : index
      %48 = vector.load %arg5[%c0_21, %c0_22] : memref<1x128xf32, #tpu.memory_space<vmem>>, vector<1x128xf32>
      tpu.vector_store %arg5[%c0_21, %c0_22], %47 {strides = array<i32>} : memref<1x128xf32, #tpu.memory_space<vmem>>, vector<1x128xf32>,
    } else {
    }
    return
  }
  func.func @transform_0(%arg0: i32, %arg1: i32) -> (i32, i32) {
    %c1_i32 = arith.constant 1 : i32
    %0 = arith.muli %arg0, %c1_i32 : i32
    %1 = arith.addi %0, %arg1 : i32
    %c0_i32 = arith.constant 0 : i32
    %2 = arith.minsi %1, %c0_i32 : i32
    %c0_i32_0 = arith.constant 0 : i32
    %c0_i32_1 = arith.constant 0 : i32
    return %2, %c0_i32_0 : i32, i32
  }
  func.func @transform_1(%arg0: i32, %arg1: i32) -> (i32, i32) {
    %c1_i32 = arith.constant 1 : i32
    %0 = arith.muli %arg0, %c1_i32 : i32
    %1 = arith.addi %0, %arg1 : i32
    %c0_i32 = arith.constant 0 : i32
    %2 = arith.minsi %1, %c0_i32 : i32
    %c0_i32_0 = arith.constant 0 : i32
    %c0_i32_1 = arith.constant 0 : i32
    return %2, %c0_i32_0 : i32, i32
  }
  func.func @transform_2(%arg0: i32, %arg1: i32) -> (i32, i32) {
    %c0_i32 = arith.constant 0 : i32
    %c0_i32_0 = arith.constant 0 : i32
    %c0_i32_1 = arith.constant 0 : i32
    return %c0_i32, %c0_i32_0 : i32, i32
  }
  func.func @transform_3(%arg0: i32, %arg1: i32) -> (i32, i32) {
    %c0_i32 = arith.constant 0 : i32
    %c0_i32_0 = arith.constant 0 : i32
    return %arg0, %c0_i32 : i32, i32
  }
}

</mosaic_0001>

<llo_original>
// kernel: tpu_custom_call.1
$region0: #{tpu_custom_call.1}
  #allocation0 [shape = 'u32[]', space=smem, size = 0x4, offset = 0x4, fixed_abs, tag = 'smem constant byte address 0x4 - core index']
  #allocation1 [shape = 'u32[72,128]{1,0:T(1,128)}', space=vmem, size = 0x9000, scoped, tag = 'internal scratch']
  #allocation2 [shape = 'f32[8,128]{1,0:T(8,128)}', space=vmem, size = 0x1000, scoped, tag = 'scratch operand']
  %s0 = inlined_call_operand.vmem [shape: f32[8,10], index: 0, kind: input, shape index: {}]
  %s1 = inlined_call_operand.vmem [shape: s32[8,1], index: 1, kind: input, shape index: {}]
  %s2 = inlined_call_operand.hbm [shape: f32[10,128], index: 2, kind: input, shape index: {}]
  %s3 = inlined_call_operand.hbm [shape: f32[1,128], index: 3, kind: output, shape index: {}]
  %s4 = sld [smem:[#allocation0]]
  $region34: #{tpu_custom_call.1} parent=0
    _
  %s6 = ssub.s32 1, %s4
  %s7 = scalar_select 0, %s6, %s4
  $region1: #{tpu_custom_call.1} parent=0
    #allocation3 [shape = 'u8[8192]{0}', space=vmem, size = 0x2000, scoped, tag = 'input window, operand 2, single buffered']
    #allocation4 [shape = 's32[1]{0}', space=sflag, size = 0x4, scoped, tag = 'scoped memory for tpu_custom_call.1']
    #allocation5 [shape = 's32[1]{0}', space=sflag, size = 0x4, scoped, tag = 'scoped memory for tpu_custom_call.1']
    #allocation6 [shape = 'u8[512]{0}', space=vmem, size = 0x400, scoped, tag = 'output window, operand 0, single buffered']
    %8 = vsyncpa [#allocation4], 0
    %9 = vsyncpa [#allocation5], 0
    // Predicated region
    $region2: #{tpu_custom_call.1} parent=1 // pred_check
      _
    $region3: #{tpu_custom_call.1} parent=1 // pred_check_branch
      %11 = sbr.rel (0) target = $region5
    $region4: #{tpu_custom_call.1} parent=1 // pred_region
      %s12 = sadd.s32 0, 0
      %p13 = scmp.lt.s32.totalorder %s12, 0
      %s14 = scalar_select %p13, %s12, 0
      %p15 = scmp.lt.s32.totalorder %s14, 0
      %s16 = scalar_select %p15, %s14, 0
      %s17 = smul.addr %s16, 8
      %s18 = scalar_lea.vmem %s0, %s17
      %s19 = sadd.s32 0, 0
      %p20 = scmp.lt.s32.totalorder %s19, 0
      %s21 = scalar_select %p20, %s19, 0
    $region5: #{tpu_custom_call.1} parent=1 // pred_fallthru
      _
    // Predicated region
    $region6: #{tpu_custom_call.1} parent=1 // pred_check
      _
    $region7: #{tpu_custom_call.1} parent=1 // pred_check_branch
      %23 = sbr.rel (0) target = $region9
    $region8: #{tpu_custom_call.1} parent=1 // pred_region
      %s24 = sadd.s32 0, 0
      %p25 = scmp.lt.s32.totalorder %s24, 0
      %s26 = scalar_select %p25, %s24, 0
      %p27 = scmp.lt.s32.totalorder %s26, 0
      %s28 = scalar_select %p27, %s26, 0
      %s29 = smul.addr %s28, 8
      %s30 = scalar_lea.vmem %s1, %s29
      %s31 = sadd.s32 0, 0
      %p32 = scmp.lt.s32.totalorder %s31, 0
      %s33 = scalar_select %p32, %s31, 0
    $region9: #{tpu_custom_call.1} parent=1 // pred_fallthru
      _
    // Predicated region
    $region10: #{tpu_custom_call.1} parent=1 // pred_check
      _
    $region11: #{tpu_custom_call.1} parent=1 // pred_check_branch
      %35 = sbr.rel (0) target = $region13
    $region12: #{tpu_custom_call.1} parent=1 // pred_region
      %37 = vsyncadd [#allocation4], 0
      %s38 = sshll.u32 %s2, 4
      %s39 = int_to_ptr.hbm [resolvable:$true] %s38
      %s40 = sshll.u32 [#allocation3], 4
      %s41 = int_to_ptr.vmem [resolvable:$true] %s40
      %46 = dma.hbm_to_vmem [thread:$0]  %s39, 256, %s41, [#allocation4], 128, 128, 8
    $region13: #{tpu_custom_call.1} parent=1 // pred_fallthru
      _
    // Predicated region
    $region14: #{tpu_custom_call.1} parent=1 // pred_check
      _
    $region15: #{tpu_custom_call.1} parent=1 // pred_check_branch
      %48 = sbr.rel (0) target = $region17
    $region16: #{tpu_custom_call.1} parent=1 // pred_region
      %50 = dma.done [#allocation4], 256
    $region17: #{tpu_custom_call.1} parent=1 // pred_fallthru
      _
    %s51 = sadd.s32 0, 0
    %p52 = scmp.lt.s32.totalorder %s51, 0
    %s53 = scalar_select %p52, %s51, 0
    %p54 = scmp.lt.s32.totalorder %s53, 0
    %s55 = scalar_select %p54, %s53, 0
    %s56 = smul.addr %s55, 8
    %s57 = scalar_lea.vmem %s0, %s56
    %s58 = sadd.s32 0, 0
    %p59 = scmp.lt.s32.totalorder %s58, 0
    %s60 = scalar_select %p59, %s58, 0
    %p61 = scmp.lt.s32.totalorder %s60, 0
    %s62 = scalar_select %p61, %s60, 0
    %s63 = smul.addr %s62, 8
    %s64 = scalar_lea.vmem %s1, %s63
    %s65 = sadd.s32 0, 0
    %p66 = scmp.lt.s32.totalorder %s65, 0
    %s67 = scalar_select %p66, %s65, 0
    %p68 = scmp.lt.s32.totalorder %s67, 0
    %s69 = scalar_select %p68, %s67, 0
    %s70 = smul.addr %s69, 8
    %s71 = scalar_lea.vmem %s0, %s70
    %s72 = sadd.s32 0, 0
    %p73 = scmp.lt.s32.totalorder %s72, 0
    %s74 = scalar_select %p73, %s72, 0
    %s75 = sadd.s32 0, 0
    %p76 = scmp.lt.s32.totalorder %s75, 0
    %s77 = scalar_select %p76, %s75, 0
    %p78 = scmp.lt.s32.totalorder %s77, 0
    %s79 = scalar_select %p78, %s77, 0
    %s80 = smul.addr %s79, 8
    %s81 = scalar_lea.vmem %s1, %s80
    %s82 = sadd.s32 0, 0
    %p83 = scmp.lt.s32.totalorder %s82, 0
    %s84 = scalar_select %p83, %s82, 0
    %p85 = scmp.eq.s32.totalorder 0, 0
    // Predicated region
    $region18: #{tpu_custom_call.1} parent=1 // pred_check
      %p86 = pneg %p85
    $region19: #{tpu_custom_call.1} parent=1 // pred_check_branch
      %88 = sbr.rel (%p86) target = $region21
    $region20: #{tpu_custom_call.1} parent=1 // pred_region
      %89 = vst [vmem:[#allocation2] sm:$0xff] 0.0
    $region21: #{tpu_custom_call.1} parent=1 // pred_fallthru
      _
    %s90 = sadd.s32 0, 0
    %v91 = vlaneseq
    %v92 = vshrl.u32 %v91, 7
    %s93 = smul.u32 %s90, 8
    %v94 = vstv %s93
    %v95 = vadd.s32 %v92, %v94
    %vm96 = vcmp.lt.s32.totalorder %v95, 8
    %v97 = vld [vmem:[%s71] sm:$0xff]
    %v98 = vsel %vm96, 1, 0
    %vm99 = vcmp.eq.s32.totalorder %v98, 1
    %v100 = vsel %vm99, %v97, 0.0
    %v101 = vld [vmem:[%s81] sm:$0xff]
    %vm102 = vcmask 80896
    %v103 = vsel %vm102, %v100, -inf
    %104 = vmax.xlane.f32.xlu0 %v103
    %v105 = vpop.xlane.xlu0 %104
    %v106 = vsub.f32 %v100, %v105
    %v107 = vmul.f32 %v106, 1.442695
    %v108 = vpow.pop %v107
    %v109 = vsel %vm102, %v108, 0.0
    %110 = vadd.xlane.f32.xlu0 %v109
    %v111 = vpop.xlane.xlu0 %110
    %v112 = vlog2.pop %v111
    %v113 = vmul.f32 %v112, 0.6931472
    %v114 = vadd.f32 %v113, %v105
    %v115 = vlaneseq
    %v116 = vand.u32 %v115, 127
    %117 = vset.pattern.permute.xlu0 0
    %118 = vperm.xlu0 %117, %v101
    %v119 = vpop.permute.xlu0 %118
    %vm120 = vcmp.eq.s32.totalorder %v116, %v119
    %vm121 = vmand %vm120, %vm99
    %v122 = vsub.f32 %v100, %v114
    %v123 = vsel %vm121, %v122, 0.0
    %v124 = vld [vmem:[#allocation3] sm:$0xff]
    %v125 = vld [vmem:[#allocation3 + $0x8] sm:$0x3]
    %v126 = vld [vmem:[#allocation2] sm:$0xff]
    %v128 = vsel %vm102, %v123, 0
    %vm130 = vcmask 1041408
    %v132 = vsel %vm130, %v125, 0
    %134 = vmatpush.msra.mxu0 0.0
    %135 = vmatpush.msra.mxu0 0.0
    %136 = vmatpush.msra.mxu0 0.0
    %137 = vmatpush.msra.mxu0 0.0
    %138 = vmatpush.msra.mxu0 0.0
    %139 = vmatpush.msra.mxu0 0.0
    %140 = vmatpush.msra.mxu0 0.0
    %141 = vmatpush.msra.mxu0 0.0
    %142 = vmatpush.msra.mxu0 0.0
    %143 = vmatpush.msra.mxu0 0.0
    %144 = vmatpush.msra.mxu0 0.0
    %145 = vmatpush.msra.mxu0 0.0
    %146 = vmatpush.msra.mxu0 0.0
    %147 = vmatpush.msra.mxu0 0.0
    %148 = vmatpush.msra.mxu0 %v132
    %149 = vmatpush.msra.mxu0 %v124
    %150 = vmatmul.f32.gmra.mxu0 %v128
    %v151 = vpop.f32.mrf.mxu0
    %v152 = vadd.f32 0.0, %v151
    %153 = vdwg.mxu0
    %v154 = vadd.f32 %v126, %v152
    %155 = vst [vmem:[#allocation2] sm:$0xff] %v154
    // Predicated region
    $region22: #{tpu_custom_call.1} parent=1 // pred_check
      %p156 = pneg %p85
    $region23: #{tpu_custom_call.1} parent=1 // pred_check_branch
      %158 = sbr.rel (%p156) target = $region25
    $region24: #{tpu_custom_call.1} parent=1 // pred_region
      %v159 = vld [vmem:[#allocation2] sm:$0xff]
      %v160 = vrot.slane %v159, 4
      %v161 = vadd.f32 %v159, %v160
      %v162 = vrot.slane %v161, 2
      %v163 = vadd.f32 %v161, %v162
      %v164 = vrot.slane %v163, 1
      %v165 = vadd.f32 %v163, %v164
      %166 = vst [vmem:[#allocation6] sm:$0x1] %v165
    $region25: #{tpu_custom_call.1} parent=1 // pred_fallthru
      _
    // Predicated region
    $region26: #{tpu_custom_call.1} parent=1 // pred_check
      _
    $region27: #{tpu_custom_call.1} parent=1 // pred_check_branch
      %168 = sbr.rel (0) target = $region29
    $region28: #{tpu_custom_call.1} parent=1 // pred_region
      %170 = vsyncadd [#allocation5], 0
      %s172 = sshll.u32 [#allocation6], 4
      %s173 = int_to_ptr.vmem [resolvable:$true] %s172
      %s174 = sshll.u32 %s3, 4
      %s175 = int_to_ptr.hbm [resolvable:$true] %s174
      %177 = dma.vmem_to_hbm [thread:$0]  %s173, 16, %s175, [#allocation5]
    $region29: #{tpu_custom_call.1} parent=1 // pred_fallthru
      _
    // Predicated region
    $region30: #{tpu_custom_call.1} parent=1 // pred_check
      _
    $region31: #{tpu_custom_call.1} parent=1 // pred_check_branch
      %179 = sbr.rel (0) target = $region33
    $region32: #{tpu_custom_call.1} parent=1 // pred_region
      %181 = dma.done [#allocation5], 16
    $region33: #{tpu_custom_call.1} parent=1 // pred_fallthru
      _
    %182 = vsyncpa [#allocation4], 1
    %183 = vsyncpa [#allocation5], 1

</llo_original>
